<compile_context>
chip_gen: v7x
topology: tpu7x:2x2x1
jax: 0.10.0
libtpu: 0.0.40
codegen_flags: <defaults>
</compile_context>

<pallas_src>
import math

import jax
import jax.numpy as jnp
from jax.experimental import pallas as pl
from jax.experimental.pallas import tpu as pltpu


def _round_up(x: int, m: int) -> int:
    return ((x + m - 1) // m) * m


# Unknown activation names fall back to ReLU — this matches the torch module's
# `else: self.activation = nn.ReLU()` branch (intentional, not a silent bug).
_ACTIVATIONS = {
    "relu": lambda h: jnp.maximum(h, 0.0),
    "tanh": jnp.tanh,
    "leaky_relu": lambda h: jnp.where(h > 0, h, 0.01 * h),
}


# ----------------------------------------------------------------------------
# Kernel factory: fused N-layer MLP on one batch tile.
#   refs = (x_ref, w1_ref, b1_ref, ..., wL_ref, bL_ref, out_ref)
# ----------------------------------------------------------------------------
def _make_qnetwork_kernel(num_layers: int, activation: str):
    act = _ACTIVATIONS.get(activation, _ACTIVATIONS["relu"])

    def kernel(*refs):
        x_ref = refs[0]
        out_ref = refs[-1]

        h = x_ref[...]                               # (tm, state_dim) bf16
        for l in range(num_layers):
            w_ref = refs[1 + 2 * l]
            b_ref = refs[2 + 2 * l]
            # bf16 x bf16 -> f32 accumulation on the MXU.
            h = jnp.dot(h, w_ref[...], preferred_element_type=jnp.float32)
            h = h + b_ref[...]                       # (1, out) bias broadcast, f32
            if l < num_layers - 1:
                # Bias + activation in f32 (v5e VPU has no bf16), then drop the
                # live inter-layer intermediate to bf16 immediately so wide
                # hidden layers don't double vreg/VMEM pressure.
                h = act(h).astype(jnp.bfloat16)
        out_ref[...] = h.astype(out_ref.dtype)       # Q head: no activation

    return kernel


def _build_in_specs(tm, state_dim, ws, bs, single_buffer_params):
    x_spec = pl.BlockSpec((tm, state_dim), lambda i: (i, 0))
    resident = lambda i: (0, 0)     # same block every grid step -> DMA'd once
    specs = [x_spec]
    for w, b in zip(ws, bs):
        if single_buffer_params:
            specs.append(pl.BlockSpec(w.shape, resident,
                                      pipeline_mode=pl.Buffered(1)))
            specs.append(pl.BlockSpec(b.shape, resident,
                                      pipeline_mode=pl.Buffered(1)))
        else:
            specs.append(pl.BlockSpec(w.shape, resident))
            specs.append(pl.BlockSpec(b.shape, resident))
    return specs


# Flipped off automatically if this jax build rejects pipeline_mode=Buffered(1).
_PARAM_SINGLE_BUFFER = True


# ----------------------------------------------------------------------------
# Wrapper: batch-tiled pallas_call with VMEM-resident, single-buffered params.
# ----------------------------------------------------------------------------
def qnetwork_forward(x, params, *, activation: str = "relu", tile_m: int = 1024):
    """Fused QNetwork forward pass.

    x:      (batch, state_dim) float array
    params: dict w1,b1,...,wL,bL  (weights (in_dim, out_dim), biases (1, out_dim))
    returns (batch, action_dim) float32 Q-values.
    """
    global _PARAM_SINGLE_BUFFER

    num_layers = len(params) // 2
    ws = [params[f"w{i + 1}"].astype(jnp.bfloat16) for i in range(num_layers)]
    bs = [params[f"b{i + 1}"].astype(jnp.float32) for i in range(num_layers)]

    batch, state_dim = x.shape
    action_dim = ws[-1].shape[1]
    max_dim = max([state_dim] + [int(w.shape[1]) for w in ws])

    # ---------------------------------------------------------------- tiling
    # Per-row VMEM bytes: double-buffered x tile + double-buffered out tile +
    # f32/bf16 live intermediates (x2 headroom).
    param_bytes = (sum(int(w.size) * 2 for w in ws)
                   + sum(int(b.size) * 4 for b in bs))
    per_row = 2 * state_dim * 2 + 2 * action_dim * 4 + 2 * max_dim * (4 + 2)
    work_budget = 24 * 1024 * 1024          # under every scoped-VMEM default
    cap_rows = max(16, (work_budget - 2 * param_bytes) // max(per_row, 1))
    tile_cap = max(16, min(_round_up(tile_m, 16), (cap_rows // 16) * 16))

    # Balanced tiling: fix the step count, split the batch evenly, round each
    # tile to 16 rows (native bf16 sublane tile) -> minimal padding waste.
    steps = max(1, pl.cdiv(batch, tile_cap))
    # >= 2 steps when there is enough work: lets the "parallel" batch axis
    # shard across both v7x TensorCores; near-free on 1-TC v5e/v6e.
    if steps < 2 and batch >= 64:
        steps = 2
    tm = max(16, _round_up(pl.cdiv(batch, steps), 16))
    padded_batch = steps * tm

    if padded_batch != batch:
        # Padded rows produce garbage Q-values; they are sliced off below and
        # nothing reduces over the batch axis inside the kernel.
        x = jnp.pad(x, ((0, padded_batch - batch), (0, 0)))
    x = x.astype(jnp.bfloat16)              # halves the streamed x read

    operands = [x]
    for w, b in zip(ws, bs):
        operands += [w, b]

    # Unpadded Q head (block last dim == full array dim): no 128-lane pad, so
    # the HBM writeback is only padded_batch * action_dim * 4 bytes.
    out_spec = pl.BlockSpec((tm, action_dim), lambda i: (i, 0))
    out_shape = jax.ShapeDtypeStruct((padded_batch, action_dim), jnp.float32)

    flops = 2 * padded_batch * sum(int(w.shape[0]) * int(w.shape[1]) for w in ws)
    transcendentals = (padded_batch * sum(int(w.shape[1]) for w in ws[:-1])
                       if activation == "tanh" else 0)
    bytes_accessed = int(x.size) * 2 + param_bytes + padded_batch * action_dim * 4

    vmem_limit = int(min(64 * 1024 * 1024,
                         max(16 * 1024 * 1024,
                             2 * param_bytes + 2 * tm * per_row + (4 << 20))))

    kernel = _make_qnetwork_kernel(num_layers, activation)
    compiler_params = pltpu.CompilerParams(
        dimension_semantics=("parallel",),
        vmem_limit_bytes=vmem_limit)
    cost = pl.CostEstimate(flops=flops, transcendentals=transcendentals,
                           bytes_accessed=int(bytes_accessed))

    def _run(single_buffer_params):
        return pl.pallas_call(
            kernel,
            out_shape=out_shape,
            grid=(steps,),
            in_specs=_build_in_specs(tm, state_dim, ws, bs, single_buffer_params),
            out_specs=out_spec,
            compiler_params=compiler_params,
            cost_estimate=cost,
        )(*operands)

    if _PARAM_SINGLE_BUFFER:
        try:
            return _run(True)[:batch]
        except Exception:
            # pipeline_mode=pl.Buffered(1) unsupported on this jax build; fall
            # back to default (double-buffered) parameter specs.
            _PARAM_SINGLE_BUFFER = False
    return _run(False)[:batch]


# ----------------------------------------------------------------------------
# Deterministic parameter init mimicking torch.nn.Linear's
# U(-1/sqrt(fan_in), 1/sqrt(fan_in)).
# ----------------------------------------------------------------------------
def init_qnetwork_params(key, state_dim, action_dim, hidden_layers):
    dims = [state_dim] + list(hidden_layers) + [action_dim]
    params = {}
    keys = jax.random.split(key, 2 * (len(dims) - 1))
    for i in range(len(dims) - 1):
        fan_in, fan_out = dims[i], dims[i + 1]
        bound = 1.0 / math.sqrt(fan_in)
        params[f"w{i + 1}"] = jax.random.uniform(
            keys[2 * i], (fan_in, fan_out), minval=-bound, maxval=bound,
            dtype=jnp.float32)
        params[f"b{i + 1}"] = jax.random.uniform(
            keys[2 * i + 1], (1, fan_out), minval=-bound, maxval=bound,
            dtype=jnp.float32)
    return params


# Pure-JAX reference matching the kernel's bf16-matmul / f32-accumulate path.
def _ref_forward(x, params, num_hidden, activation="relu"):
    act = _ACTIVATIONS.get(activation, _ACTIVATIONS["relu"])
    h = x.astype(jnp.bfloat16)
    for i in range(num_hidden + 1):
        w = params[f"w{i + 1}"].astype(jnp.bfloat16)
        b = params[f"b{i + 1}"].astype(jnp.float32)
        h = jnp.dot(h, w, preferred_element_type=jnp.float32) + b
        if i < num_hidden:
            h = act(h).astype(jnp.bfloat16)
    return h


if __name__ == "__main__":
    # Shapes consistent with QNetwork(state_dim, action_dim, hidden_layers).
    batch = 8
    state_dim = 16
    action_dim = 4
    hidden_layers = [32, 32]

    key = jax.random.PRNGKey(0)
    key_x, key_p = jax.random.split(key)

    x = jax.random.normal(key_x, (batch, state_dim), dtype=jnp.float32)
    params = init_qnetwork_params(key_p, state_dim, action_dim, hidden_layers)

    q_values = qnetwork_forward(x, params)
    jax.block_until_ready(q_values)
    ref = _ref_forward(x, params, len(hidden_layers))
    assert q_values.shape == (batch, action_dim)
    assert q_values.dtype == jnp.float32
    assert jnp.allclose(q_values, ref, atol=1e-3, rtol=1e-3), (
        float(jnp.max(jnp.abs(q_values - ref))))

    # Multi-step grid + balanced batch padding (batch not a tile multiple).
    batch2 = 200
    x2 = jax.random.normal(jax.random.PRNGKey(1), (batch2, state_dim),
                           dtype=jnp.float32)
    q2 = qnetwork_forward(x2, params, tile_m=64)
    jax.block_until_ready(q2)
    ref2 = _ref_forward(x2, params, len(hidden_layers))
    assert q2.shape == (batch2, action_dim)
    assert jnp.allclose(q2, ref2, atol=1e-3, rtol=1e-3), (
        float(jnp.max(jnp.abs(q2 - ref2))))

    # tanh variant (EUP transcendental path); looser tol for tanh impl deltas.
    q3 = qnetwork_forward(x, params, activation="tanh")
    jax.block_until_ready(q3)
    ref3 = _ref_forward(x, params, len(hidden_layers), activation="tanh")
    assert jnp.allclose(q3, ref3, atol=1e-2, rtol=1e-2), (
        float(jnp.max(jnp.abs(q3 - ref3))))

    print("KERNEL_OK")
</pallas_src>

<mosaic_0001>
module attributes {stable_mosaic.version = 11 : i64} {
  func.func @kernel(%arg0: i32, %arg1: memref<16x16xbf16, #tpu.memory_space<vmem>>, %arg2: memref<16x32xbf16, #tpu.memory_space<vmem>>, %arg3: memref<1x32xf32, #tpu.memory_space<vmem>>, %arg4: memref<32x32xbf16, #tpu.memory_space<vmem>>, %arg5: memref<1x32xf32, #tpu.memory_space<vmem>>, %arg6: memref<32x4xbf16, #tpu.memory_space<vmem>>, %arg7: memref<1x4xf32, #tpu.memory_space<vmem>>, %arg8: memref<16x4xf32, #tpu.memory_space<vmem>>) attributes {dimension_semantics = [#tpu.dimension_semantics<parallel>], iteration_bounds = array<i64: 1>, scalar_prefetch = 0 : i64, scratch_operands = 0 : i64, tpu.core_type = #tpu.core_type<tc>, window_params = [{transform_indices = @transform_0, window_bounds = array<i64: 16, 16>}, {pipeline_mode = #tpu.pipeline_mode<synchronous>, transform_indices = @transform_1, window_bounds = array<i64: 16, 32>}, {pipeline_mode = #tpu.pipeline_mode<synchronous>, transform_indices = @transform_2, window_bounds = array<i64: 1, 32>}, {pipeline_mode = #tpu.pipeline_mode<synchronous>, transform_indices = @transform_3, window_bounds = array<i64: 32, 32>}, {pipeline_mode = #tpu.pipeline_mode<synchronous>, transform_indices = @transform_4, window_bounds = array<i64: 1, 32>}, {pipeline_mode = #tpu.pipeline_mode<synchronous>, transform_indices = @transform_5, window_bounds = array<i64: 32, 4>}, {pipeline_mode = #tpu.pipeline_mode<synchronous>, transform_indices = @transform_6, window_bounds = array<i64: 1, 4>}, {transform_indices = @transform_7, window_bounds = array<i64: 16, 4>}]} {
    %c0 = arith.constant 0 : index
    %c0_0 = arith.constant 0 : index
    %0 = vector.load %arg1[%c0, %c0_0] : memref<16x16xbf16, #tpu.memory_space<vmem>>, vector<16x16xbf16>
    %c0_1 = arith.constant 0 : index
    %c0_2 = arith.constant 0 : index
    %1 = vector.load %arg2[%c0_1, %c0_2] : memref<16x32xbf16, #tpu.memory_space<vmem>>, vector<16x32xbf16>
    %cst = arith.constant dense<0.000000e+00> : vector<16x32xf32>
    %2 = tpu.matmul %0, %1, %cst {dimension_numbers = #tpu.dot_dimension_numbers<[1], [0], [0], [1], [0, 0, 1, 1], [], []>} : vector<16x16xbf16>, vector<16x32xbf16>, vector<16x32xf32> -> vector<16x32xf32>
    %c0_3 = arith.constant 0 : index
    %c0_4 = arith.constant 0 : index
    %3 = vector.load %arg3[%c0_3, %c0_4] : memref<1x32xf32, #tpu.memory_space<vmem>>, vector<1x32xf32>
    %4 = vector.broadcast %3 : vector<1x32xf32> to vector<16x32xf32>
    %5 = arith.addf %2, %4 : vector<16x32xf32>
    %cst_5 = arith.constant 0.000000e+00 : f32
    %6 = vector.broadcast %cst_5 : f32 to vector<16x32xf32>
    %7 = arith.maximumf %5, %6 : vector<16x32xf32>
    %8 = arith.truncf %7 : vector<16x32xf32> to vector<16x32xbf16>
    %c0_6 = arith.constant 0 : index
    %c0_7 = arith.constant 0 : index
    %9 = vector.load %arg4[%c0_6, %c0_7] : memref<32x32xbf16, #tpu.memory_space<vmem>>, vector<32x32xbf16>
    %cst_8 = arith.constant dense<0.000000e+00> : vector<16x32xf32>
    %10 = tpu.matmul %8, %9, %cst_8 {dimension_numbers = #tpu.dot_dimension_numbers<[1], [0], [0], [1], [0, 0, 1, 1], [], []>} : vector<16x32xbf16>, vector<32x32xbf16>, vector<16x32xf32> -> vector<16x32xf32>
    %c0_9 = arith.constant 0 : index
    %c0_10 = arith.constant 0 : index
    %11 = vector.load %arg5[%c0_9, %c0_10] : memref<1x32xf32, #tpu.memory_space<vmem>>, vector<1x32xf32>
    %12 = vector.broadcast %11 : vector<1x32xf32> to vector<16x32xf32>
    %13 = arith.addf %10, %12 : vector<16x32xf32>
    %cst_11 = arith.constant 0.000000e+00 : f32
    %14 = vector.broadcast %cst_11 : f32 to vector<16x32xf32>
    %15 = arith.maximumf %13, %14 : vector<16x32xf32>
    %16 = arith.truncf %15 : vector<16x32xf32> to vector<16x32xbf16>
    %c0_12 = arith.constant 0 : index
    %c0_13 = arith.constant 0 : index
    %17 = vector.load %arg6[%c0_12, %c0_13] : memref<32x4xbf16, #tpu.memory_space<vmem>>, vector<32x4xbf16>
    %cst_14 = arith.constant dense<0.000000e+00> : vector<16x4xf32>
    %18 = tpu.matmul %16, %17, %cst_14 {dimension_numbers = #tpu.dot_dimension_numbers<[1], [0], [0], [1], [0, 0, 1, 1], [], []>} : vector<16x32xbf16>, vector<32x4xbf16>, vector<16x4xf32> -> vector<16x4xf32>
    %c0_15 = arith.constant 0 : index
    %c0_16 = arith.constant 0 : index
    %19 = vector.load %arg7[%c0_15, %c0_16] : memref<1x4xf32, #tpu.memory_space<vmem>>, vector<1x4xf32>
    %20 = vector.broadcast %19 : vector<1x4xf32> to vector<16x4xf32>
    %21 = arith.addf %18, %20 : vector<16x4xf32>
    %c0_17 = arith.constant 0 : index
    %c0_18 = arith.constant 0 : index
    %22 = vector.load %arg8[%c0_17, %c0_18] : memref<16x4xf32, #tpu.memory_space<vmem>>, vector<16x4xf32>
    tpu.vector_store %arg8[%c0_17, %c0_18], %21 {strides = array<i32>} : memref<16x4xf32, #tpu.memory_space<vmem>>, vector<16x4xf32>,
    return
  }
  func.func @transform_0(%arg0: i32) -> (i32, i32) {
    %c0_i32 = arith.constant 0 : i32
    %c0_i32_0 = arith.constant 0 : i32
    return %arg0, %c0_i32 : i32, i32
  }
  func.func @transform_1(%arg0: i32) -> (i32, i32) {
    %c0_i32 = arith.constant 0 : i32
    %c0_i32_0 = arith.constant 0 : i32
    %c0_i32_1 = arith.constant 0 : i32
    return %c0_i32, %c0_i32_0 : i32, i32
  }
  func.func @transform_2(%arg0: i32) -> (i32, i32) {
    %c0_i32 = arith.constant 0 : i32
    %c0_i32_0 = arith.constant 0 : i32
    %c0_i32_1 = arith.constant 0 : i32
    return %c0_i32, %c0_i32_0 : i32, i32
  }
  func.func @transform_3(%arg0: i32) -> (i32, i32) {
    %c0_i32 = arith.constant 0 : i32
    %c0_i32_0 = arith.constant 0 : i32
    %c0_i32_1 = arith.constant 0 : i32
    return %c0_i32, %c0_i32_0 : i32, i32
  }
  func.func @transform_4(%arg0: i32) -> (i32, i32) {
    %c0_i32 = arith.constant 0 : i32
    %c0_i32_0 = arith.constant 0 : i32
    %c0_i32_1 = arith.constant 0 : i32
    return %c0_i32, %c0_i32_0 : i32, i32
  }
  func.func @transform_5(%arg0: i32) -> (i32, i32) {
    %c0_i32 = arith.constant 0 : i32
    %c0_i32_0 = arith.constant 0 : i32
    %c0_i32_1 = arith.constant 0 : i32
    return %c0_i32, %c0_i32_0 : i32, i32
  }
  func.func @transform_6(%arg0: i32) -> (i32, i32) {
    %c0_i32 = arith.constant 0 : i32
    %c0_i32_0 = arith.constant 0 : i32
    %c0_i32_1 = arith.constant 0 : i32
    return %c0_i32, %c0_i32_0 : i32, i32
  }
  func.func @transform_7(%arg0: i32) -> (i32, i32) {
    %c0_i32 = arith.constant 0 : i32
    %c0_i32_0 = arith.constant 0 : i32
    return %arg0, %c0_i32 : i32, i32
  }
}

module attributes {stable_mosaic.version = 11 : i64} {
  func.func @kernel(%arg0: i32, %arg1: memref<16x16xbf16, #tpu.memory_space<vmem>>, %arg2: memref<16x32xbf16, #tpu.memory_space<vmem>>, %arg3: memref<1x32xf32, #tpu.memory_space<vmem>>, %arg4: memref<32x32xbf16, #tpu.memory_space<vmem>>, %arg5: memref<1x32xf32, #tpu.memory_space<vmem>>, %arg6: memref<32x4xbf16, #tpu.memory_space<vmem>>, %arg7: memref<1x4xf32, #tpu.memory_space<vmem>>, %arg8: memref<16x4xf32, #tpu.memory_space<vmem>>) attributes {dimension_semantics = [#tpu.dimension_semantics<parallel>], iteration_bounds = array<i64: 1>, scalar_prefetch = 0 : i64, scratch_operands = 0 : i64, tpu.core_type = #tpu.core_type<tc>, window_params = [{transform_indices = @transform_0, window_bounds = array<i64: 16, 16>}, {pipeline_mode = #tpu.pipeline_mode<synchronous>, transform_indices = @transform_1, window_bounds = array<i64: 16, 32>}, {pipeline_mode = #tpu.pipeline_mode<synchronous>, transform_indices = @transform_2, window_bounds = array<i64: 1, 32>}, {pipeline_mode = #tpu.pipeline_mode<synchronous>, transform_indices = @transform_3, window_bounds = array<i64: 32, 32>}, {pipeline_mode = #tpu.pipeline_mode<synchronous>, transform_indices = @transform_4, window_bounds = array<i64: 1, 32>}, {pipeline_mode = #tpu.pipeline_mode<synchronous>, transform_indices = @transform_5, window_bounds = array<i64: 32, 4>}, {pipeline_mode = #tpu.pipeline_mode<synchronous>, transform_indices = @transform_6, window_bounds = array<i64: 1, 4>}, {transform_indices = @transform_7, window_bounds = array<i64: 16, 4>}]} {
    %c0 = arith.constant 0 : index
    %c0_0 = arith.constant 0 : index
    %0 = vector.load %arg1[%c0, %c0_0] : memref<16x16xbf16, #tpu.memory_space<vmem>>, vector<16x16xbf16>
    %c0_1 = arith.constant 0 : index
    %c0_2 = arith.constant 0 : index
    %1 = vector.load %arg2[%c0_1, %c0_2] : memref<16x32xbf16, #tpu.memory_space<vmem>>, vector<16x32xbf16>
    %cst = arith.constant dense<0.000000e+00> : vector<16x32xf32>
    %2 = tpu.matmul %0, %1, %cst {dimension_numbers = #tpu.dot_dimension_numbers<[1], [0], [0], [1], [0, 0, 1, 1], [], []>} : vector<16x16xbf16>, vector<16x32xbf16>, vector<16x32xf32> -> vector<16x32xf32>
    %c0_3 = arith.constant 0 : index
    %c0_4 = arith.constant 0 : index
    %3 = vector.load %arg3[%c0_3, %c0_4] : memref<1x32xf32, #tpu.memory_space<vmem>>, vector<1x32xf32>
    %4 = vector.broadcast %3 : vector<1x32xf32> to vector<16x32xf32>
    %5 = arith.addf %2, %4 : vector<16x32xf32>
    %cst_5 = arith.constant 0.000000e+00 : f32
    %6 = vector.broadcast %cst_5 : f32 to vector<16x32xf32>
    %7 = arith.maximumf %5, %6 : vector<16x32xf32>
    %8 = arith.truncf %7 : vector<16x32xf32> to vector<16x32xbf16>
    %c0_6 = arith.constant 0 : index
    %c0_7 = arith.constant 0 : index
    %9 = vector.load %arg4[%c0_6, %c0_7] : memref<32x32xbf16, #tpu.memory_space<vmem>>, vector<32x32xbf16>
    %cst_8 = arith.constant dense<0.000000e+00> : vector<16x32xf32>
    %10 = tpu.matmul %8, %9, %cst_8 {dimension_numbers = #tpu.dot_dimension_numbers<[1], [0], [0], [1], [0, 0, 1, 1], [], []>} : vector<16x32xbf16>, vector<32x32xbf16>, vector<16x32xf32> -> vector<16x32xf32>
    %c0_9 = arith.constant 0 : index
    %c0_10 = arith.constant 0 : index
    %11 = vector.load %arg5[%c0_9, %c0_10] : memref<1x32xf32, #tpu.memory_space<vmem>>, vector<1x32xf32>
    %12 = vector.broadcast %11 : vector<1x32xf32> to vector<16x32xf32>
    %13 = arith.addf %10, %12 : vector<16x32xf32>
    %cst_11 = arith.constant 0.000000e+00 : f32
    %14 = vector.broadcast %cst_11 : f32 to vector<16x32xf32>
    %15 = arith.maximumf %13, %14 : vector<16x32xf32>
    %16 = arith.truncf %15 : vector<16x32xf32> to vector<16x32xbf16>
    %c0_12 = arith.constant 0 : index
    %c0_13 = arith.constant 0 : index
    %17 = vector.load %arg6[%c0_12, %c0_13] : memref<32x4xbf16, #tpu.memory_space<vmem>>, vector<32x4xbf16>
    %cst_14 = arith.constant dense<0.000000e+00> : vector<16x4xf32>
    %18 = tpu.matmul %16, %17, %cst_14 {dimension_numbers = #tpu.dot_dimension_numbers<[1], [0], [0], [1], [0, 0, 1, 1], [], []>} : vector<16x32xbf16>, vector<32x4xbf16>, vector<16x4xf32> -> vector<16x4xf32>
    %c0_15 = arith.constant 0 : index
    %c0_16 = arith.constant 0 : index
    %19 = vector.load %arg7[%c0_15, %c0_16] : memref<1x4xf32, #tpu.memory_space<vmem>>, vector<1x4xf32>
    %20 = vector.broadcast %19 : vector<1x4xf32> to vector<16x4xf32>
    %21 = arith.addf %18, %20 : vector<16x4xf32>
    %c0_17 = arith.constant 0 : index
    %c0_18 = arith.constant 0 : index
    %22 = vector.load %arg8[%c0_17, %c0_18] : memref<16x4xf32, #tpu.memory_space<vmem>>, vector<16x4xf32>
    tpu.vector_store %arg8[%c0_17, %c0_18], %21 {strides = array<i32>} : memref<16x4xf32, #tpu.memory_space<vmem>>, vector<16x4xf32>,
    return
  }
  func.func @transform_0(%arg0: i32) -> (i32, i32) {
    %c0_i32 = arith.constant 0 : i32
    %c0_i32_0 = arith.constant 0 : i32
    return %arg0, %c0_i32 : i32, i32
  }
  func.func @transform_1(%arg0: i32) -> (i32, i32) {
    %c0_i32 = arith.constant 0 : i32
    %c0_i32_0 = arith.constant 0 : i32
    %c0_i32_1 = arith.constant 0 : i32
    return %c0_i32, %c0_i32_0 : i32, i32
  }
  func.func @transform_2(%arg0: i32) -> (i32, i32) {
    %c0_i32 = arith.constant 0 : i32
    %c0_i32_0 = arith.constant 0 : i32
    %c0_i32_1 = arith.constant 0 : i32
    return %c0_i32, %c0_i32_0 : i32, i32
  }
  func.func @transform_3(%arg0: i32) -> (i32, i32) {
    %c0_i32 = arith.constant 0 : i32
    %c0_i32_0 = arith.constant 0 : i32
    %c0_i32_1 = arith.constant 0 : i32
    return %c0_i32, %c0_i32_0 : i32, i32
  }
  func.func @transform_4(%arg0: i32) -> (i32, i32) {
    %c0_i32 = arith.constant 0 : i32
    %c0_i32_0 = arith.constant 0 : i32
    %c0_i32_1 = arith.constant 0 : i32
    return %c0_i32, %c0_i32_0 : i32, i32
  }
  func.func @transform_5(%arg0: i32) -> (i32, i32) {
    %c0_i32 = arith.constant 0 : i32
    %c0_i32_0 = arith.constant 0 : i32
    %c0_i32_1 = arith.constant 0 : i32
    return %c0_i32, %c0_i32_0 : i32, i32
  }
  func.func @transform_6(%arg0: i32) -> (i32, i32) {
    %c0_i32 = arith.constant 0 : i32
    %c0_i32_0 = arith.constant 0 : i32
    %c0_i32_1 = arith.constant 0 : i32
    return %c0_i32, %c0_i32_0 : i32, i32
  }
  func.func @transform_7(%arg0: i32) -> (i32, i32) {
    %c0_i32 = arith.constant 0 : i32
    %c0_i32_0 = arith.constant 0 : i32
    return %arg0, %c0_i32 : i32, i32
  }
}

</mosaic_0001>

<llo_original>
// kernel: tpu_custom_call.1
$region0: #{tpu_custom_call.1}
  #allocation0 [shape = 'u32[]', space=smem, size = 0x4, offset = 0x4, fixed_abs, tag = 'smem constant byte address 0x4 - core index']
  #allocation1 [shape = 'u32[144,128]{1,0:T(1,128)}', space=vmem, size = 0x12000, scoped, tag = 'internal scratch']
  %s0 = inlined_call_operand.vmem [shape: bf16[16,16], index: 0, kind: input, shape index: {}]
  %s1 = inlined_call_operand.hbm [shape: bf16[16,32], index: 1, kind: input, shape index: {}]
  %s2 = inlined_call_operand.vmem [shape: f32[1,32], index: 2, kind: input, shape index: {}]
  %s3 = inlined_call_operand.vmem [shape: bf16[32,32], index: 3, kind: input, shape index: {}]
  %s4 = inlined_call_operand.vmem [shape: f32[1,32], index: 4, kind: input, shape index: {}]
  %s5 = inlined_call_operand.vmem [shape: bf16[32,4], index: 5, kind: input, shape index: {}]
  %s6 = inlined_call_operand.vmem [shape: f32[1,4], index: 6, kind: input, shape index: {}]
  %s7 = inlined_call_operand.vmem [shape: f32[16,4], index: 7, kind: output, shape index: {}]
  %s8 = sld [smem:[#allocation0]]
  $region42: #{tpu_custom_call.1} parent=0
    _
  %s10 = ssub.s32 1, %s8
  %s11 = scalar_select 0, %s10, %s8
  $region1: #{tpu_custom_call.1} parent=0
    #allocation2 [shape = 'u8[4096]{0}', space=vmem, size = 0x1000, scoped, tag = 'input window, operand 1, single buffered']
    #allocation3 [shape = 's32[1]{0}', space=sflag, size = 0x4, scoped, tag = 'scoped memory for tpu_custom_call.1']
    %12 = vsyncpa [#allocation3], 0
    // Predicated region
    $region2: #{tpu_custom_call.1} parent=1 // pred_check
      _
    $region3: #{tpu_custom_call.1} parent=1 // pred_check_branch
      %14 = sbr.rel (0) target = $region5
    $region4: #{tpu_custom_call.1} parent=1 // pred_region
      _
    $region5: #{tpu_custom_call.1} parent=1 // pred_fallthru
      _
    // Predicated region
    $region6: #{tpu_custom_call.1} parent=1 // pred_check
      _
    $region7: #{tpu_custom_call.1} parent=1 // pred_check_branch
      %16 = sbr.rel (0) target = $region9
    $region8: #{tpu_custom_call.1} parent=1 // pred_region
      %s18 = ssub.s32 128, 128
      %19 = vsyncadd [#allocation3], %s18
      %s20 = sshll.u32 [#allocation2], 4
      %s21 = int_to_ptr.vmem [resolvable:$true] %s20
      %26 = dma.hbm_to_vmem [thread:$0]  %s1, 128, %s21, [#allocation3], 64, 64, 4
    $region9: #{tpu_custom_call.1} parent=1 // pred_fallthru
      _
    // Predicated region
    $region10: #{tpu_custom_call.1} parent=1 // pred_check
      _
    $region11: #{tpu_custom_call.1} parent=1 // pred_check_branch
      %28 = sbr.rel (0) target = $region13
    $region12: #{tpu_custom_call.1} parent=1 // pred_region
      _
    $region13: #{tpu_custom_call.1} parent=1 // pred_fallthru
      _
    // Predicated region
    $region14: #{tpu_custom_call.1} parent=1 // pred_check
      _
    $region15: #{tpu_custom_call.1} parent=1 // pred_check_branch
      %30 = sbr.rel (0) target = $region17
    $region16: #{tpu_custom_call.1} parent=1 // pred_region
      _
    $region17: #{tpu_custom_call.1} parent=1 // pred_fallthru
      _
    // Predicated region
    $region18: #{tpu_custom_call.1} parent=1 // pred_check
      _
    $region19: #{tpu_custom_call.1} parent=1 // pred_check_branch
      %32 = sbr.rel (0) target = $region21
    $region20: #{tpu_custom_call.1} parent=1 // pred_region
      _
    $region21: #{tpu_custom_call.1} parent=1 // pred_fallthru
      _
    // Predicated region
    $region22: #{tpu_custom_call.1} parent=1 // pred_check
      _
    $region23: #{tpu_custom_call.1} parent=1 // pred_check_branch
      %34 = sbr.rel (0) target = $region25
    $region24: #{tpu_custom_call.1} parent=1 // pred_region
      _
    $region25: #{tpu_custom_call.1} parent=1 // pred_fallthru
      _
    // Predicated region
    $region26: #{tpu_custom_call.1} parent=1 // pred_check
      _
    $region27: #{tpu_custom_call.1} parent=1 // pred_check_branch
      %36 = sbr.rel (0) target = $region29
    $region28: #{tpu_custom_call.1} parent=1 // pred_region
      _
    $region29: #{tpu_custom_call.1} parent=1 // pred_fallthru
      _
    // Predicated region
    $region30: #{tpu_custom_call.1} parent=1 // pred_check
      _
    $region31: #{tpu_custom_call.1} parent=1 // pred_check_branch
      %38 = sbr.rel (0) target = $region33
    $region32: #{tpu_custom_call.1} parent=1 // pred_region
      %39 = dma.done [#allocation3], 128
    $region33: #{tpu_custom_call.1} parent=1 // pred_fallthru
      _
    %v41 = vld [vmem:[%s0] sm:$0xf]
    %v42 = vld [vmem:[%s0 + $0x4] sm:$0xf]
    %v43 = vld [vmem:[#allocation2] sm:$0xf]
    %v44 = vld [vmem:[#allocation2 + $0x4] sm:$0xf]
    %v45 = vld [vmem:[%s2] sm:$0x1]
    %v47 = vlaneseq
    %v48 = vshrl.u32 %v47, 7
    %v49 = vsub.s32 0, %v48
    %v50 = vrot.slane %v45, %v49
    %v54 = vunpack.c.l.b16 %v41
    %v55 = vunpack.c.l.b16 %v42
    %v56 = vpack.c.b16 %v55, %v54
    %v59 = vunpack.c.l.b16 %v43
    %v60 = vunpack.c.l.b16 %v44
    %v61 = vpack.c.b16 %v60, %v59
    %vm63 = vcmask 130048
    %v65 = vsel %vm63, %v56, 0
    %67 = vmatprep.subr.bf16.mxu0 0
    %68 = vmatpush1.bf16.msra.mxu0 %v61
    %69 = vmatprep.subr.bf16.mxu0 0
    %70 = vmatpush1.bf16.msra.mxu0 0
    %71 = vmatprep.subr.bf16.mxu0 0
    %72 = vmatpush1.bf16.msra.mxu0 0
    %73 = vmatprep.subr.bf16.mxu0 0
    %74 = vmatpush1.bf16.msra.mxu0 0
    %75 = vmatprep.subr.bf16.mxu0 0
    %76 = vmatpush1.bf16.msra.mxu0 0
    %77 = vmatprep.subr.bf16.mxu0 0
    %78 = vmatpush1.bf16.msra.mxu0 0
    %79 = vmatprep.subr.bf16.mxu0 0
    %80 = vmatpush1.bf16.msra.mxu0 0
    %81 = vmatprep.subr.bf16.mxu0 0
    %82 = vmatpush1.bf16.msra.mxu0 0
    %83 = vmatprep.subr.bf16.mxu0 0
    %84 = vmatpush1.bf16.msra.mxu0 0
    %85 = vmatprep.subr.bf16.mxu0 0
    %86 = vmatpush1.bf16.msra.mxu0 0
    %87 = vmatprep.subr.bf16.mxu0 0
    %88 = vmatpush1.bf16.msra.mxu0 0
    %89 = vmatprep.subr.bf16.mxu0 0
    %90 = vmatpush1.bf16.msra.mxu0 0
    %91 = vmatprep.subr.bf16.mxu0 0
    %92 = vmatpush1.bf16.msra.mxu0 0
    %93 = vmatprep.subr.bf16.mxu0 0
    %94 = vmatpush1.bf16.msra.mxu0 0
    %95 = vmatprep.subr.bf16.mxu0 0
    %96 = vmatpush1.bf16.msra.mxu0 0
    %97 = vmatprep.subr.bf16.mxu0 0
    %98 = vmatpush1.bf16.msra.mxu0 0
    %99 = vmatprep.mubr.bf16.mxu0 0
    %100 = vmatmul.mubr.bf16.gmra.mrb[0].mxu0 %v65
    %v101 = vpop.f32.mrb[0].mxu0
    %v102 = vadd.f32 %v50, %v101
    %v103 = vpop.f32.mrb[0].mxu0
    %v104 = vpop.f32.mrb[0].mxu0
    %v105 = vadd.f32 %v50, %v104
    %v106 = vpop.f32.mrb[0].mxu0
    %107 = vdwg.mxu0
    %v108 = vmax.f32 %v102, 0.0
    %v109 = vmax.f32 %v105, 0.0
    %v110 = vpack.c.bf16 %v109, %v108
    %v111 = vld [vmem:[%s3] sm:$0xf]
    %v112 = vld [vmem:[%s3 + $0x4] sm:$0xf]
    %v113 = vld [vmem:[%s3 + $0x8] sm:$0xf]
    %v114 = vld [vmem:[%s3 + $0xc] sm:$0xf]
    %v115 = vld [vmem:[%s4] sm:$0x1]
    %v117 = vlaneseq
    %v118 = vshrl.u32 %v117, 7
    %v119 = vsub.s32 0, %v118
    %v120 = vrot.slane %v115, %v119
    %v126 = vunpack.c.l.b16 %v111
    %v127 = vunpack.c.l.b16 %v112
    %v128 = vunpack.c.l.b16 %v113
    %v129 = vunpack.c.l.b16 %v114
    %v130 = vpack.c.b16 %v127, %v126
    %v131 = vpack.c.b16 %v129, %v128
    %vm134 = vcmask 261120
    %v136 = vsel %vm134, %v110, 0
    %138 = vmatprep.subr.bf16.mxu0 0
    %139 = vmatpush1.bf16.msra.mxu0 %v130
    %140 = vmatprep.subr.bf16.mxu0 0
    %141 = vmatpush1.bf16.msra.mxu0 %v131
    %142 = vmatprep.subr.bf16.mxu0 0
    %143 = vmatpush1.bf16.msra.mxu0 0
    %144 = vmatprep.subr.bf16.mxu0 0
    %145 = vmatpush1.bf16.msra.mxu0 0
    %146 = vmatprep.subr.bf16.mxu0 0
    %147 = vmatpush1.bf16.msra.mxu0 0
    %148 = vmatprep.subr.bf16.mxu0 0
    %149 = vmatpush1.bf16.msra.mxu0 0
    %150 = vmatprep.subr.bf16.mxu0 0
    %151 = vmatpush1.bf16.msra.mxu0 0
    %152 = vmatprep.subr.bf16.mxu0 0
    %153 = vmatpush1.bf16.msra.mxu0 0
    %154 = vmatprep.subr.bf16.mxu0 0
    %155 = vmatpush1.bf16.msra.mxu0 0
    %156 = vmatprep.subr.bf16.mxu0 0
    %157 = vmatpush1.bf16.msra.mxu0 0
    %158 = vmatprep.subr.bf16.mxu0 0
    %159 = vmatpush1.bf16.msra.mxu0 0
    %160 = vmatprep.subr.bf16.mxu0 0
    %161 = vmatpush1.bf16.msra.mxu0 0
    %162 = vmatprep.subr.bf16.mxu0 0
    %163 = vmatpush1.bf16.msra.mxu0 0
    %164 = vmatprep.subr.bf16.mxu0 0
    %165 = vmatpush1.bf16.msra.mxu0 0
    %166 = vmatprep.subr.bf16.mxu0 0
    %167 = vmatpush1.bf16.msra.mxu0 0
    %168 = vmatprep.subr.bf16.mxu0 0
    %169 = vmatpush1.bf16.msra.mxu0 0
    %170 = vmatprep.mubr.bf16.mxu0 0
    %171 = vmatmul.mubr.bf16.gmra.mrb[0].mxu0 %v136
    %v172 = vpop.f32.mrb[0].mxu0
    %v173 = vadd.f32 %v120, %v172
    %v174 = vpop.f32.mrb[0].mxu0
    %v175 = vpop.f32.mrb[0].mxu0
    %v176 = vadd.f32 %v120, %v175
    %v177 = vpop.f32.mrb[0].mxu0
    %178 = vdwg.mxu0
    %v179 = vmax.f32 %v173, 0.0
    %v180 = vmax.f32 %v176, 0.0
    %v181 = vpack.c.bf16 %v180, %v179
    %v182 = vld [vmem:[%s5] sm:$0xf]
    %v183 = vld [vmem:[%s5 + $0x4] sm:$0xf]
    %v184 = vld [vmem:[%s5 + $0x8] sm:$0xf]
    %v185 = vld [vmem:[%s5 + $0xc] sm:$0xf]
    %v186 = vld [vmem:[%s6] sm:$0x1]
    %v188 = vlaneseq
    %v189 = vshrl.u32 %v188, 7
    %v190 = vsub.s32 0, %v189
    %v191 = vrot.slane %v186, %v190
    %v197 = vunpack.c.l.b16 %v182
    %v198 = vunpack.c.l.b16 %v183
    %v199 = vunpack.c.l.b16 %v184
    %v200 = vunpack.c.l.b16 %v185
    %v201 = vpack.c.b16 %v198, %v197
    %v202 = vpack.c.b16 %v200, %v199
    %v206 = vsel %vm134, %v181, 0
    %208 = vmatprep.subr.bf16.mxu0 0
    %209 = vmatpush1.bf16.msra.mxu0 %v201
    %210 = vmatprep.subr.bf16.mxu0 0
    %211 = vmatpush1.bf16.msra.mxu0 %v202
    %212 = vmatprep.subr.bf16.mxu0 0
    %213 = vmatpush1.bf16.msra.mxu0 0
    %214 = vmatprep.subr.bf16.mxu0 0
    %215 = vmatpush1.bf16.msra.mxu0 0
    %216 = vmatprep.subr.bf16.mxu0 0
    %217 = vmatpush1.bf16.msra.mxu0 0
    %218 = vmatprep.subr.bf16.mxu0 0
    %219 = vmatpush1.bf16.msra.mxu0 0
    %220 = vmatprep.subr.bf16.mxu0 0
    %221 = vmatpush1.bf16.msra.mxu0 0
    %222 = vmatprep.subr.bf16.mxu0 0
    %223 = vmatpush1.bf16.msra.mxu0 0
    %224 = vmatprep.subr.bf16.mxu0 0
    %225 = vmatpush1.bf16.msra.mxu0 0
    %226 = vmatprep.subr.bf16.mxu0 0
    %227 = vmatpush1.bf16.msra.mxu0 0
    %228 = vmatprep.subr.bf16.mxu0 0
    %229 = vmatpush1.bf16.msra.mxu0 0
    %230 = vmatprep.subr.bf16.mxu0 0
    %231 = vmatpush1.bf16.msra.mxu0 0
    %232 = vmatprep.subr.bf16.mxu0 0
    %233 = vmatpush1.bf16.msra.mxu0 0
    %234 = vmatprep.subr.bf16.mxu0 0
    %235 = vmatpush1.bf16.msra.mxu0 0
    %236 = vmatprep.subr.bf16.mxu0 0
    %237 = vmatpush1.bf16.msra.mxu0 0
    %238 = vmatprep.subr.bf16.mxu0 0
    %239 = vmatpush1.bf16.msra.mxu0 0
    %240 = vmatprep.mubr.bf16.mxu0 0
    %241 = vmatmul.mubr.bf16.gmra.mrb[0].mxu0 %v206
    %v242 = vpop.f32.mrb[0].mxu0
    %v243 = vadd.f32 %v191, %v242
    %v244 = vpop.f32.mrb[0].mxu0
    %v245 = vpop.f32.mrb[0].mxu0
    %v246 = vadd.f32 %v191, %v245
    %v247 = vpop.f32.mrb[0].mxu0
    %248 = vdwg.mxu0
    %vm249 = vcmask 31744
    %250 = vst.msk [vmem:[%s7] sm:$0xff] %vm249, %v243
    %251 = vst.msk [vmem:[%s7 + $0x8] sm:$0xff] %vm249, %v246
    // Predicated region
    $region34: #{tpu_custom_call.1} parent=1 // pred_check
      _
    $region35: #{tpu_custom_call.1} parent=1 // pred_check_branch
      %253 = sbr.rel (0) target = $region37
    $region36: #{tpu_custom_call.1} parent=1 // pred_region
      _
    $region37: #{tpu_custom_call.1} parent=1 // pred_fallthru
      _
    // Predicated region
    $region38: #{tpu_custom_call.1} parent=1 // pred_check
      _
    $region39: #{tpu_custom_call.1} parent=1 // pred_check_branch
      %255 = sbr.rel (0) target = $region41
    $region40: #{tpu_custom_call.1} parent=1 // pred_region
      _
    $region41: #{tpu_custom_call.1} parent=1 // pred_fallthru
      _
    %256 = vsyncpa [#allocation3], 1

// kernel: tpu_custom_call.1
$region0: #{tpu_custom_call.1}
  #allocation0 [shape = 'u32[]', space=smem, size = 0x4, offset = 0x4, fixed_abs, tag = 'smem constant byte address 0x4 - core index']
  #allocation1 [shape = 'u32[144,128]{1,0:T(1,128)}', space=vmem, size = 0x12000, scoped, tag = 'internal scratch']
  %s0 = inlined_call_operand.vmem [shape: bf16[16,16], index: 0, kind: input, shape index: {}]
  %s1 = inlined_call_operand.hbm [shape: bf16[16,32], index: 1, kind: input, shape index: {}]
  %s2 = inlined_call_operand.vmem [shape: f32[1,32], index: 2, kind: input, shape index: {}]
  %s3 = inlined_call_operand.vmem [shape: bf16[32,32], index: 3, kind: input, shape index: {}]
  %s4 = inlined_call_operand.vmem [shape: f32[1,32], index: 4, kind: input, shape index: {}]
  %s5 = inlined_call_operand.vmem [shape: bf16[32,4], index: 5, kind: input, shape index: {}]
  %s6 = inlined_call_operand.vmem [shape: f32[1,4], index: 6, kind: input, shape index: {}]
  %s7 = inlined_call_operand.vmem [shape: f32[16,4], index: 7, kind: output, shape index: {}]
  %s8 = sld [smem:[#allocation0]]
  $region42: #{tpu_custom_call.1} parent=0
    _
  %s10 = ssub.s32 1, %s8
  %s11 = scalar_select 0, %s10, %s8
  $region1: #{tpu_custom_call.1} parent=0
    #allocation2 [shape = 'u8[4096]{0}', space=vmem, size = 0x1000, scoped, tag = 'input window, operand 1, single buffered']
    #allocation3 [shape = 's32[1]{0}', space=sflag, size = 0x4, scoped, tag = 'scoped memory for tpu_custom_call.1']
    %12 = vsyncpa [#allocation3], 0
    // Predicated region
    $region2: #{tpu_custom_call.1} parent=1 // pred_check
      _
    $region3: #{tpu_custom_call.1} parent=1 // pred_check_branch
      %14 = sbr.rel (0) target = $region5
    $region4: #{tpu_custom_call.1} parent=1 // pred_region
      _
    $region5: #{tpu_custom_call.1} parent=1 // pred_fallthru
      _
    // Predicated region
    $region6: #{tpu_custom_call.1} parent=1 // pred_check
      _
    $region7: #{tpu_custom_call.1} parent=1 // pred_check_branch
      %16 = sbr.rel (0) target = $region9
    $region8: #{tpu_custom_call.1} parent=1 // pred_region
      %s18 = ssub.s32 128, 128
      %19 = vsyncadd [#allocation3], %s18
      %s20 = sshll.u32 [#allocation2], 4
      %s21 = int_to_ptr.vmem [resolvable:$true] %s20
      %26 = dma.hbm_to_vmem [thread:$0]  %s1, 128, %s21, [#allocation3], 64, 64, 4
    $region9: #{tpu_custom_call.1} parent=1 // pred_fallthru
      _
    // Predicated region
    $region10: #{tpu_custom_call.1} parent=1 // pred_check
      _
    $region11: #{tpu_custom_call.1} parent=1 // pred_check_branch
      %28 = sbr.rel (0) target = $region13
    $region12: #{tpu_custom_call.1} parent=1 // pred_region
      _
    $region13: #{tpu_custom_call.1} parent=1 // pred_fallthru
      _
    // Predicated region
    $region14: #{tpu_custom_call.1} parent=1 // pred_check
      _
    $region15: #{tpu_custom_call.1} parent=1 // pred_check_branch
      %30 = sbr.rel (0) target = $region17
    $region16: #{tpu_custom_call.1} parent=1 // pred_region
      _
    $region17: #{tpu_custom_call.1} parent=1 // pred_fallthru
      _
    // Predicated region
    $region18: #{tpu_custom_call.1} parent=1 // pred_check
      _
    $region19: #{tpu_custom_call.1} parent=1 // pred_check_branch
      %32 = sbr.rel (0) target = $region21
    $region20: #{tpu_custom_call.1} parent=1 // pred_region
      _
    $region21: #{tpu_custom_call.1} parent=1 // pred_fallthru
      _
    // Predicated region
    $region22: #{tpu_custom_call.1} parent=1 // pred_check
      _
    $region23: #{tpu_custom_call.1} parent=1 // pred_check_branch
      %34 = sbr.rel (0) target = $region25
    $region24: #{tpu_custom_call.1} parent=1 // pred_region
      _
    $region25: #{tpu_custom_call.1} parent=1 // pred_fallthru
      _
    // Predicated region
    $region26: #{tpu_custom_call.1} parent=1 // pred_check
      _
    $region27: #{tpu_custom_call.1} parent=1 // pred_check_branch
      %36 = sbr.rel (0) target = $region29
    $region28: #{tpu_custom_call.1} parent=1 // pred_region
      _
    $region29: #{tpu_custom_call.1} parent=1 // pred_fallthru
      _
    // Predicated region
    $region30: #{tpu_custom_call.1} parent=1 // pred_check
      _
    $region31: #{tpu_custom_call.1} parent=1 // pred_check_branch
      %38 = sbr.rel (0) target = $region33
    $region32: #{tpu_custom_call.1} parent=1 // pred_region
      %39 = dma.done [#allocation3], 128
    $region33: #{tpu_custom_call.1} parent=1 // pred_fallthru
      _
    %v41 = vld [vmem:[%s0] sm:$0xf]
    %v42 = vld [vmem:[%s0 + $0x4] sm:$0xf]
    %v43 = vld [vmem:[#allocation2] sm:$0xf]
    %v44 = vld [vmem:[#allocation2 + $0x4] sm:$0xf]
    %v45 = vld [vmem:[%s2] sm:$0x1]
    %v47 = vlaneseq
    %v48 = vshrl.u32 %v47, 7
    %v49 = vsub.s32 0, %v48
    %v50 = vrot.slane %v45, %v49
    %v54 = vunpack.c.l.b16 %v41
    %v55 = vunpack.c.l.b16 %v42
    %v56 = vpack.c.b16 %v55, %v54
    %v59 = vunpack.c.l.b16 %v43
    %v60 = vunpack.c.l.b16 %v44
    %v61 = vpack.c.b16 %v60, %v59
    %vm63 = vcmask 130048
    %v65 = vsel %vm63, %v56, 0
    %67 = vmatprep.subr.bf16.mxu0 0
    %68 = vmatpush1.bf16.msra.mxu0 %v61
    %69 = vmatprep.subr.bf16.mxu0 0
    %70 = vmatpush1.bf16.msra.mxu0 0
    %71 = vmatprep.subr.bf16.mxu0 0
    %72 = vmatpush1.bf16.msra.mxu0 0
    %73 = vmatprep.subr.bf16.mxu0 0
    %74 = vmatpush1.bf16.msra.mxu0 0
    %75 = vmatprep.subr.bf16.mxu0 0
    %76 = vmatpush1.bf16.msra.mxu0 0
    %77 = vmatprep.subr.bf16.mxu0 0
    %78 = vmatpush1.bf16.msra.mxu0 0
    %79 = vmatprep.subr.bf16.mxu0 0
    %80 = vmatpush1.bf16.msra.mxu0 0
    %81 = vmatprep.subr.bf16.mxu0 0
    %82 = vmatpush1.bf16.msra.mxu0 0
    %83 = vmatprep.subr.bf16.mxu0 0
    %84 = vmatpush1.bf16.msra.mxu0 0
    %85 = vmatprep.subr.bf16.mxu0 0
    %86 = vmatpush1.bf16.msra.mxu0 0
    %87 = vmatprep.subr.bf16.mxu0 0
    %88 = vmatpush1.bf16.msra.mxu0 0
    %89 = vmatprep.subr.bf16.mxu0 0
    %90 = vmatpush1.bf16.msra.mxu0 0
    %91 = vmatprep.subr.bf16.mxu0 0
    %92 = vmatpush1.bf16.msra.mxu0 0
    %93 = vmatprep.subr.bf16.mxu0 0
    %94 = vmatpush1.bf16.msra.mxu0 0
    %95 = vmatprep.subr.bf16.mxu0 0
    %96 = vmatpush1.bf16.msra.mxu0 0
    %97 = vmatprep.subr.bf16.mxu0 0
    %98 = vmatpush1.bf16.msra.mxu0 0
    %99 = vmatprep.mubr.bf16.mxu0 0
    %100 = vmatmul.mubr.bf16.gmra.mrb[0].mxu0 %v65
    %v101 = vpop.f32.mrb[0].mxu0
    %v102 = vadd.f32 %v50, %v101
    %v103 = vpop.f32.mrb[0].mxu0
    %v104 = vpop.f32.mrb[0].mxu0
    %v105 = vadd.f32 %v50, %v104
    %v106 = vpop.f32.mrb[0].mxu0
    %107 = vdwg.mxu0
    %v108 = vmax.f32 %v102, 0.0
    %v109 = vmax.f32 %v105, 0.0
    %v110 = vpack.c.bf16 %v109, %v108
    %v111 = vld [vmem:[%s3] sm:$0xf]
    %v112 = vld [vmem:[%s3 + $0x4] sm:$0xf]
    %v113 = vld [vmem:[%s3 + $0x8] sm:$0xf]
    %v114 = vld [vmem:[%s3 + $0xc] sm:$0xf]
    %v115 = vld [vmem:[%s4] sm:$0x1]
    %v117 = vlaneseq
    %v118 = vshrl.u32 %v117, 7
    %v119 = vsub.s32 0, %v118
    %v120 = vrot.slane %v115, %v119
    %v126 = vunpack.c.l.b16 %v111
    %v127 = vunpack.c.l.b16 %v112
    %v128 = vunpack.c.l.b16 %v113
    %v129 = vunpack.c.l.b16 %v114
    %v130 = vpack.c.b16 %v127, %v126
    %v131 = vpack.c.b16 %v129, %v128
    %vm134 = vcmask 261120
    %v136 = vsel %vm134, %v110, 0
    %138 = vmatprep.subr.bf16.mxu0 0
    %139 = vmatpush1.bf16.msra.mxu0 %v130
    %140 = vmatprep.subr.bf16.mxu0 0
    %141 = vmatpush1.bf16.msra.mxu0 %v131
    %142 = vmatprep.subr.bf16.mxu0 0
    %143 = vmatpush1.bf16.msra.mxu0 0
    %144 = vmatprep.subr.bf16.mxu0 0
    %145 = vmatpush1.bf16.msra.mxu0 0
    %146 = vmatprep.subr.bf16.mxu0 0
    %147 = vmatpush1.bf16.msra.mxu0 0
    %148 = vmatprep.subr.bf16.mxu0 0
    %149 = vmatpush1.bf16.msra.mxu0 0
    %150 = vmatprep.subr.bf16.mxu0 0
    %151 = vmatpush1.bf16.msra.mxu0 0
    %152 = vmatprep.subr.bf16.mxu0 0
    %153 = vmatpush1.bf16.msra.mxu0 0
    %154 = vmatprep.subr.bf16.mxu0 0
    %155 = vmatpush1.bf16.msra.mxu0 0
    %156 = vmatprep.subr.bf16.mxu0 0
    %157 = vmatpush1.bf16.msra.mxu0 0
    %158 = vmatprep.subr.bf16.mxu0 0
    %159 = vmatpush1.bf16.msra.mxu0 0
    %160 = vmatprep.subr.bf16.mxu0 0
    %161 = vmatpush1.bf16.msra.mxu0 0
    %162 = vmatprep.subr.bf16.mxu0 0
    %163 = vmatpush1.bf16.msra.mxu0 0
    %164 = vmatprep.subr.bf16.mxu0 0
    %165 = vmatpush1.bf16.msra.mxu0 0
    %166 = vmatprep.subr.bf16.mxu0 0
    %167 = vmatpush1.bf16.msra.mxu0 0
    %168 = vmatprep.subr.bf16.mxu0 0
    %169 = vmatpush1.bf16.msra.mxu0 0
    %170 = vmatprep.mubr.bf16.mxu0 0
    %171 = vmatmul.mubr.bf16.gmra.mrb[0].mxu0 %v136
    %v172 = vpop.f32.mrb[0].mxu0
    %v173 = vadd.f32 %v120, %v172
    %v174 = vpop.f32.mrb[0].mxu0
    %v175 = vpop.f32.mrb[0].mxu0
    %v176 = vadd.f32 %v120, %v175
    %v177 = vpop.f32.mrb[0].mxu0
    %178 = vdwg.mxu0
    %v179 = vmax.f32 %v173, 0.0
    %v180 = vmax.f32 %v176, 0.0
    %v181 = vpack.c.bf16 %v180, %v179
    %v182 = vld [vmem:[%s5] sm:$0xf]
    %v183 = vld [vmem:[%s5 + $0x4] sm:$0xf]
    %v184 = vld [vmem:[%s5 + $0x8] sm:$0xf]
    %v185 = vld [vmem:[%s5 + $0xc] sm:$0xf]
    %v186 = vld [vmem:[%s6] sm:$0x1]
    %v188 = vlaneseq
    %v189 = vshrl.u32 %v188, 7
    %v190 = vsub.s32 0, %v189
    %v191 = vrot.slane %v186, %v190
    %v197 = vunpack.c.l.b16 %v182
    %v198 = vunpack.c.l.b16 %v183
    %v199 = vunpack.c.l.b16 %v184
    %v200 = vunpack.c.l.b16 %v185
    %v201 = vpack.c.b16 %v198, %v197
    %v202 = vpack.c.b16 %v200, %v199
    %v206 = vsel %vm134, %v181, 0
    %208 = vmatprep.subr.bf16.mxu0 0
    %209 = vmatpush1.bf16.msra.mxu0 %v201
    %210 = vmatprep.subr.bf16.mxu0 0
    %211 = vmatpush1.bf16.msra.mxu0 %v202
    %212 = vmatprep.subr.bf16.mxu0 0
    %213 = vmatpush1.bf16.msra.mxu0 0
    %214 = vmatprep.subr.bf16.mxu0 0
    %215 = vmatpush1.bf16.msra.mxu0 0
    %216 = vmatprep.subr.bf16.mxu0 0
    %217 = vmatpush1.bf16.msra.mxu0 0
    %218 = vmatprep.subr.bf16.mxu0 0
    %219 = vmatpush1.bf16.msra.mxu0 0
    %220 = vmatprep.subr.bf16.mxu0 0
    %221 = vmatpush1.bf16.msra.mxu0 0
    %222 = vmatprep.subr.bf16.mxu0 0
    %223 = vmatpush1.bf16.msra.mxu0 0
    %224 = vmatprep.subr.bf16.mxu0 0
    %225 = vmatpush1.bf16.msra.mxu0 0
    %226 = vmatprep.subr.bf16.mxu0 0
    %227 = vmatpush1.bf16.msra.mxu0 0
    %228 = vmatprep.subr.bf16.mxu0 0
    %229 = vmatpush1.bf16.msra.mxu0 0
    %230 = vmatprep.subr.bf16.mxu0 0
    %231 = vmatpush1.bf16.msra.mxu0 0
    %232 = vmatprep.subr.bf16.mxu0 0
    %233 = vmatpush1.bf16.msra.mxu0 0
    %234 = vmatprep.subr.bf16.mxu0 0
    %235 = vmatpush1.bf16.msra.mxu0 0
    %236 = vmatprep.subr.bf16.mxu0 0
    %237 = vmatpush1.bf16.msra.mxu0 0
    %238 = vmatprep.subr.bf16.mxu0 0
    %239 = vmatpush1.bf16.msra.mxu0 0
    %240 = vmatprep.mubr.bf16.mxu0 0
    %241 = vmatmul.mubr.bf16.gmra.mrb[0].mxu0 %v206
    %v242 = vpop.f32.mrb[0].mxu0
    %v243 = vadd.f32 %v191, %v242
    %v244 = vpop.f32.mrb[0].mxu0
    %v245 = vpop.f32.mrb[0].mxu0
    %v246 = vadd.f32 %v191, %v245
    %v247 = vpop.f32.mrb[0].mxu0
    %248 = vdwg.mxu0
    %vm249 = vcmask 31744
    %250 = vst.msk [vmem:[%s7] sm:$0xff] %vm249, %v243
    %251 = vst.msk [vmem:[%s7 + $0x8] sm:$0xff] %vm249, %v246
    // Predicated region
    $region34: #{tpu_custom_call.1} parent=1 // pred_check
      _
    $region35: #{tpu_custom_call.1} parent=1 // pred_check_branch
      %253 = sbr.rel (0) target = $region37
    $region36: #{tpu_custom_call.1} parent=1 // pred_region
      _
    $region37: #{tpu_custom_call.1} parent=1 // pred_fallthru
      _
    // Predicated region
    $region38: #{tpu_custom_call.1} parent=1 // pred_check
      _
    $region39: #{tpu_custom_call.1} parent=1 // pred_check_branch
      %255 = sbr.rel (0) target = $region41
    $region40: #{tpu_custom_call.1} parent=1 // pred_region
      _
    $region41: #{tpu_custom_call.1} parent=1 // pred_fallthru
      _
    %256 = vsyncpa [#allocation3], 1

</llo_original>
